<compile_context>
chip_gen: v6e
topology: v6e:2x2x1
jax: 0.10.0
libtpu: 0.0.40
codegen_flags: <defaults>
</compile_context>

<pallas_src>
import jax
import jax.numpy as jnp
from jax.experimental import pallas as pl
from jax.experimental.pallas import tpu as pltpu


def _corrnet_kernel(img_ref, txt_ref,
                    w_i0_ref, w_t0_ref, w_dec_ref,
                    b_sum_ref, bdc_ref,
                    out_ref):
    # F.normalize(x, p=2, dim=1): x / max(||x||, eps)  ==  x * rsqrt(max(sumsq, eps^2))
    eps_sq = jnp.float32(1e-24)  # (1e-12)^2

    img = img_ref[...]
    txt = txt_ref[...]
    img_n = img * jax.lax.rsqrt(
        jnp.maximum(jnp.sum(img * img, axis=1, keepdims=True), eps_sq))
    txt_n = txt * jax.lax.rsqrt(
        jnp.maximum(jnp.sum(txt * txt, axis=1, keepdims=True), eps_sq))

    b_sum = b_sum_ref[...]        # (1, middle) == b_i0 + b_t0
    b_dec = bdc_ref[0:1, :]       # (1, E)      == [b_i2 | b_t2]
    c_dec = bdc_ref[1:2, :]       # (1, E)      == b_sum @ W_dec + b_dec
    w_dec = w_dec_ref[...]        # (middle, E) == [w_i2 | w_t2]

    # Encoders.  h1 = model(img, 0).h ; h2 = model(0, txt).h ; h3 = model(img, txt).h
    h1 = jnp.dot(img_n, w_i0_ref[...], preferred_element_type=jnp.float32) + b_sum
    h2 = jnp.dot(txt_n, w_t0_ref[...], preferred_element_type=jnp.float32) + b_sum
    h3 = h1 + h2 - b_sum

    # Decoders (one fused matmul per view; view 3 recovered algebraically).
    rec1 = jnp.dot(h1, w_dec, preferred_element_type=jnp.float32) + b_dec
    rec2 = jnp.dot(h2, w_dec, preferred_element_type=jnp.float32) + b_dec
    rec3 = rec1 + rec2 - c_dec

    # Single lane-dense packed store (unmasked full-width vst).
    tb = out_ref.shape[0]
    used = 3 * h1.shape[1] + 3 * rec1.shape[1]
    pad = out_ref.shape[1] - used
    pieces = [h1, h2, h3, rec1, rec2, rec3]
    if pad:
        pieces.append(jnp.zeros((tb, pad), jnp.float32))
    out_ref[...] = jnp.concatenate(pieces, axis=1)


def corrnet_pallas_model(image_input, text_input, params):
    """Runs the fused CorrNet kernel.

    Returns (h1, h2, h3, recx1, recy1, recx2, recy2, recx3, recy3)."""
    image_input = jnp.asarray(image_input, jnp.float32)
    text_input = jnp.asarray(text_input, jnp.float32)

    B, image_emb = image_input.shape
    text_emb = text_input.shape[1]
    middle = params["w_i0"].shape[1]
    E = image_emb + text_emb

    # Host/XLA-side operand fusion (done once, outside the kernel).
    w_i0 = jnp.asarray(params["w_i0"], jnp.float32)              # (img, mid)
    w_t0 = jnp.asarray(params["w_t0"], jnp.float32)              # (txt, mid)
    w_dec = jnp.concatenate(
        [params["w_i2"], params["w_t2"]], axis=1).astype(jnp.float32)   # (mid, E)
    b_sum = (params["b_i0"] + params["b_t0"]).reshape(1, middle).astype(jnp.float32)
    b_dec = jnp.concatenate(
        [params["b_i2"], params["b_t2"]]).reshape(1, E).astype(jnp.float32)
    c_dec = b_sum @ w_dec + b_dec                                # (1, E)
    bdc = jnp.concatenate([b_dec, c_dec], axis=0)                # (2, E)

    used = 3 * middle + 3 * E
    P = max(128, pl.cdiv(used, 128) * 128)                       # lane-dense width

    # Batch tiling: one (TB, feat) activation/output tile per grid step.
    TB = B if B <= 128 else 128
    grid = (pl.cdiv(B, TB),)

    packed = pl.pallas_call(
        _corrnet_kernel,
        out_shape=jax.ShapeDtypeStruct((B, P), jnp.float32),
        grid=grid,
        in_specs=[
            pl.BlockSpec((TB, image_emb), lambda i: (i, 0)),
            pl.BlockSpec((TB, text_emb), lambda i: (i, 0)),
            # Weights / biases stay resident across batch tiles.
            pl.BlockSpec((image_emb, middle), lambda i: (0, 0)),
            pl.BlockSpec((text_emb, middle), lambda i: (0, 0)),
            pl.BlockSpec((middle, E), lambda i: (0, 0)),
            pl.BlockSpec((1, middle), lambda i: (0, 0)),
            pl.BlockSpec((2, E), lambda i: (0, 0)),
        ],
        out_specs=pl.BlockSpec((TB, P), lambda i: (i, 0)),
        compiler_params=pltpu.CompilerParams(
            dimension_semantics=("parallel",)),
    )(image_input, text_input, w_i0, w_t0, w_dec, b_sum, bdc)

    M = middle
    h1 = packed[:, 0:M]
    h2 = packed[:, M:2 * M]
    h3 = packed[:, 2 * M:3 * M]
    r1 = packed[:, 3 * M:3 * M + E]
    r2 = packed[:, 3 * M + E:3 * M + 2 * E]
    r3 = packed[:, 3 * M + 2 * E:3 * M + 3 * E]
    recx1, recy1 = r1[:, :image_emb], r1[:, image_emb:]
    recx2, recy2 = r2[:, :image_emb], r2[:, image_emb:]
    recx3, recy3 = r3[:, :image_emb], r3[:, image_emb:]
    return h1, h2, h3, recx1, recy1, recx2, recy2, recx3, recy3


def corrnet_loss(h1, h2, recx1, recx2, recx3, recy1, recy2, recy3, lamda=0.02):
    # TODO(synk): `loss_function` is an externally injected nn.Module in the
    # reference; here we use a standard CorrNet-style surrogate (cross-view
    # reconstruction consistency minus correlation of h1/h2) in plain JAX.
    h1c = h1 - jnp.mean(h1, axis=0, keepdims=True)
    h2c = h2 - jnp.mean(h2, axis=0, keepdims=True)
    corr = jnp.sum(h1c * h2c) / (
        jnp.sqrt(jnp.sum(h1c * h1c)) * jnp.sqrt(jnp.sum(h2c * h2c)) + 1e-12)
    rec = (jnp.mean((recx1 - recx3) ** 2) + jnp.mean((recx2 - recx3) ** 2) +
           jnp.mean((recy1 - recy3) ** 2) + jnp.mean((recy2 - recy3) ** 2))
    return rec - lamda * corr


def corrnet_forward(image_input, text_input, params):
    """Mirrors Corrnet_Model.forward: returns (h3, h1, h2, recx3, recy3, loss)."""
    (h1, h2, h3,
     recx1, recy1, recx2, recy2, recx3, recy3) = corrnet_pallas_model(
        image_input, text_input, params)
    loss = corrnet_loss(h1, h2, recx1, recx2, recx3, recy1, recy2, recy3)
    return h3, h1, h2, recx3, recy3, loss


def _init_params(key, image_emb, text_emb, middle):
    ks = jax.random.split(key, 8)
    s = 0.05
    return {
        "w_i0": s * jax.random.normal(ks[0], (image_emb, middle), jnp.float32),
        "b_i0": s * jax.random.normal(ks[1], (middle,), jnp.float32),
        "w_t0": s * jax.random.normal(ks[2], (text_emb, middle), jnp.float32),
        "b_t0": s * jax.random.normal(ks[3], (middle,), jnp.float32),
        "w_i2": s * jax.random.normal(ks[4], (middle, image_emb), jnp.float32),
        "b_i2": s * jax.random.normal(ks[5], (image_emb,), jnp.float32),
        "w_t2": s * jax.random.normal(ks[6], (middle, text_emb), jnp.float32),
        "b_t2": s * jax.random.normal(ks[7], (text_emb,), jnp.float32),
        # dense_image_1 / dense_text_1 / dense_common exist in __init__ but are
        # unused in forward(), so they are omitted here.
    }


def _reference_forward(image_input, text_input, params):
    """Pure-JAX reference mirroring the PyTorch forward exactly."""
    eps = 1e-12

    def norm(x):
        return x / jnp.maximum(
            jnp.sqrt(jnp.sum(x * x, axis=1, keepdims=True)), eps)

    img_n, txt_n = norm(image_input), norm(text_input)
    zeros_img = jnp.zeros_like(image_input)
    zeros_txt = jnp.zeros_like(text_input)

    def model(xi, xt):
        h = (xi @ params["w_i0"] + params["b_i0"]) + \
            (xt @ params["w_t0"] + params["b_t0"])
        rx = h @ params["w_i2"] + params["b_i2"]
        ry = h @ params["w_t2"] + params["b_t2"]
        return rx, ry, h

    recx1, recy1, h1 = model(img_n, zeros_txt)
    recx2, recy2, h2 = model(zeros_img, txt_n)
    recx3, recy3, h3 = model(img_n, txt_n)
    return h1, h2, h3, recx1, recy1, recx2, recy2, recx3, recy3


if __name__ == "__main__":
    batch, image_emb, text_emb, middle = 8, 32, 24, 16

    key = jax.random.PRNGKey(0)
    k_img, k_txt, k_par = jax.random.split(key, 3)
    image_input = jax.random.normal(k_img, (batch, image_emb), jnp.float32)
    text_input = jax.random.normal(k_txt, (batch, text_emb), jnp.float32)
    params = _init_params(k_par, image_emb, text_emb, middle)

    h3, h1, h2, recx3, recy3, loss = jax.block_until_ready(
        corrnet_forward(image_input, text_input, params))

    # Sanity-check kernel against the pure-JAX reference.
    ref = _reference_forward(image_input, text_input, params)
    got = corrnet_pallas_model(image_input, text_input, params)
    for r, g in zip(ref, got):
        assert r.shape == g.shape, (r.shape, g.shape)
        assert jnp.allclose(r, g, atol=1e-4, rtol=1e-4), "kernel mismatch"

    assert h3.shape == (batch, middle)
    assert h1.shape == (batch, middle)
    assert h2.shape == (batch, middle)
    assert recx3.shape == (batch, image_emb)
    assert recy3.shape == (batch, text_emb)
    assert loss.shape == ()

    print("KERNEL_OK")
</pallas_src>

<mosaic_0001>
module attributes {stable_mosaic.version = 11 : i64} {
  func.func @_corrnet_kernel(%arg0: i32, %arg1: memref<8x32xf32, #tpu.memory_space<vmem>>, %arg2: memref<8x24xf32, #tpu.memory_space<vmem>>, %arg3: memref<32x16xf32, #tpu.memory_space<vmem>>, %arg4: memref<24x16xf32, #tpu.memory_space<vmem>>, %arg5: memref<16x56xf32, #tpu.memory_space<vmem>>, %arg6: memref<1x16xf32, #tpu.memory_space<vmem>>, %arg7: memref<2x56xf32, #tpu.memory_space<vmem>>, %arg8: memref<8x256xf32, #tpu.memory_space<vmem>>) attributes {dimension_semantics = [#tpu.dimension_semantics<parallel>], iteration_bounds = array<i64: 1>, scalar_prefetch = 0 : i64, scratch_operands = 0 : i64, tpu.core_type = #tpu.core_type<tc>, window_params = [{transform_indices = @transform_0, window_bounds = array<i64: 8, 32>}, {transform_indices = @transform_1, window_bounds = array<i64: 8, 24>}, {pipeline_mode = #tpu.pipeline_mode<synchronous>, transform_indices = @transform_2, window_bounds = array<i64: 32, 16>}, {pipeline_mode = #tpu.pipeline_mode<synchronous>, transform_indices = @transform_3, window_bounds = array<i64: 24, 16>}, {pipeline_mode = #tpu.pipeline_mode<synchronous>, transform_indices = @transform_4, window_bounds = array<i64: 16, 56>}, {pipeline_mode = #tpu.pipeline_mode<synchronous>, transform_indices = @transform_5, window_bounds = array<i64: 1, 16>}, {pipeline_mode = #tpu.pipeline_mode<synchronous>, transform_indices = @transform_6, window_bounds = array<i64: 2, 56>}, {transform_indices = @transform_7, window_bounds = array<i64: 8, 256>}]} {
    %c0 = arith.constant 0 : index
    %c0_0 = arith.constant 0 : index
    %0 = vector.load %arg1[%c0, %c0_0] : memref<8x32xf32, #tpu.memory_space<vmem>>, vector<8x32xf32>
    %c0_1 = arith.constant 0 : index
    %c0_2 = arith.constant 0 : index
    %1 = vector.load %arg2[%c0_1, %c0_2] : memref<8x24xf32, #tpu.memory_space<vmem>>, vector<8x24xf32>
    %2 = arith.mulf %0, %0 : vector<8x32xf32>
    %cst = arith.constant dense<0.000000e+00> : vector<8xf32>
    %3 = vector.multi_reduction <add>, %2, %cst [1] : vector<8x32xf32> to vector<8xf32>
    %4 = vector.shape_cast %3 : vector<8xf32> to vector<8x1xf32>
    %cst_3 = arith.constant 1.000000e-24 : f32
    %5 = vector.broadcast %cst_3 : f32 to vector<8x1xf32>
    %6 = arith.maximumf %4, %5 : vector<8x1xf32>
    %7 = math.rsqrt %6 : vector<8x1xf32>
    %8 = vector.broadcast %7 : vector<8x1xf32> to vector<8x32xf32>
    %9 = arith.mulf %0, %8 : vector<8x32xf32>
    %10 = arith.mulf %1, %1 : vector<8x24xf32>
    %cst_4 = arith.constant dense<0.000000e+00> : vector<8xf32>
    %11 = vector.multi_reduction <add>, %10, %cst_4 [1] : vector<8x24xf32> to vector<8xf32>
    %12 = vector.shape_cast %11 : vector<8xf32> to vector<8x1xf32>
    %cst_5 = arith.constant 1.000000e-24 : f32
    %13 = vector.broadcast %cst_5 : f32 to vector<8x1xf32>
    %14 = arith.maximumf %12, %13 : vector<8x1xf32>
    %15 = math.rsqrt %14 : vector<8x1xf32>
    %16 = vector.broadcast %15 : vector<8x1xf32> to vector<8x24xf32>
    %17 = arith.mulf %1, %16 : vector<8x24xf32>
    %c0_6 = arith.constant 0 : index
    %c0_7 = arith.constant 0 : index
    %18 = vector.load %arg6[%c0_6, %c0_7] : memref<1x16xf32, #tpu.memory_space<vmem>>, vector<1x16xf32>
    %c0_8 = arith.constant 0 : index
    %c0_9 = arith.constant 0 : index
    %19 = vector.load %arg7[%c0_8, %c0_9] : memref<2x56xf32, #tpu.memory_space<vmem>>, vector<1x56xf32>
    %c1 = arith.constant 1 : index
    %c0_10 = arith.constant 0 : index
    %20 = vector.load %arg7[%c1, %c0_10] : memref<2x56xf32, #tpu.memory_space<vmem>>, vector<1x56xf32>
    %c0_11 = arith.constant 0 : index
    %c0_12 = arith.constant 0 : index
    %21 = vector.load %arg5[%c0_11, %c0_12] : memref<16x56xf32, #tpu.memory_space<vmem>>, vector<16x56xf32>
    %c0_13 = arith.constant 0 : index
    %c0_14 = arith.constant 0 : index
    %22 = vector.load %arg3[%c0_13, %c0_14] : memref<32x16xf32, #tpu.memory_space<vmem>>, vector<32x16xf32>
    %cst_15 = arith.constant dense<0.000000e+00> : vector<8x16xf32>
    %23 = tpu.matmul %9, %22, %cst_15 {dimension_numbers = #tpu.dot_dimension_numbers<[1], [0], [0], [1], [0, 0, 1, 1], [], []>} : vector<8x32xf32>, vector<32x16xf32>, vector<8x16xf32> -> vector<8x16xf32>
    %24 = vector.broadcast %18 : vector<1x16xf32> to vector<8x16xf32>
    %25 = arith.addf %23, %24 : vector<8x16xf32>
    %c0_16 = arith.constant 0 : index
    %c0_17 = arith.constant 0 : index
    %26 = vector.load %arg4[%c0_16, %c0_17] : memref<24x16xf32, #tpu.memory_space<vmem>>, vector<24x16xf32>
    %cst_18 = arith.constant dense<0.000000e+00> : vector<8x16xf32>
    %27 = tpu.matmul %17, %26, %cst_18 {dimension_numbers = #tpu.dot_dimension_numbers<[1], [0], [0], [1], [0, 0, 1, 1], [], []>} : vector<8x24xf32>, vector<24x16xf32>, vector<8x16xf32> -> vector<8x16xf32>
    %28 = vector.broadcast %18 : vector<1x16xf32> to vector<8x16xf32>
    %29 = arith.addf %27, %28 : vector<8x16xf32>
    %30 = arith.addf %25, %29 : vector<8x16xf32>
    %31 = vector.broadcast %18 : vector<1x16xf32> to vector<8x16xf32>
    %32 = arith.subf %30, %31 : vector<8x16xf32>
    %cst_19 = arith.constant dense<0.000000e+00> : vector<8x56xf32>
    %33 = tpu.matmul %25, %21, %cst_19 {dimension_numbers = #tpu.dot_dimension_numbers<[1], [0], [0], [1], [0, 0, 1, 1], [], []>} : vector<8x16xf32>, vector<16x56xf32>, vector<8x56xf32> -> vector<8x56xf32>
    %34 = vector.broadcast %19 : vector<1x56xf32> to vector<8x56xf32>
    %35 = arith.addf %33, %34 : vector<8x56xf32>
    %cst_20 = arith.constant dense<0.000000e+00> : vector<8x56xf32>
    %36 = tpu.matmul %29, %21, %cst_20 {dimension_numbers = #tpu.dot_dimension_numbers<[1], [0], [0], [1], [0, 0, 1, 1], [], []>} : vector<8x16xf32>, vector<16x56xf32>, vector<8x56xf32> -> vector<8x56xf32>
    %37 = vector.broadcast %19 : vector<1x56xf32> to vector<8x56xf32>
    %38 = arith.addf %36, %37 : vector<8x56xf32>
    %39 = arith.addf %35, %38 : vector<8x56xf32>
    %40 = vector.broadcast %20 : vector<1x56xf32> to vector<8x56xf32>
    %41 = arith.subf %39, %40 : vector<8x56xf32>
    %cst_21 = arith.constant 0.000000e+00 : f32
    %42 = vector.broadcast %cst_21 : f32 to vector<8x40xf32>
    %43 = tpu.concatenate %25, %29, %32, %35, %38, %41, %42 in 1 : vector<8x16xf32>, vector<8x16xf32>, vector<8x16xf32>, vector<8x56xf32>, vector<8x56xf32>, vector<8x56xf32>, vector<8x40xf32> -> vector<8x256xf32>
    %c0_22 = arith.constant 0 : index
    %c0_23 = arith.constant 0 : index
    %44 = vector.load %arg8[%c0_22, %c0_23] : memref<8x256xf32, #tpu.memory_space<vmem>>, vector<8x256xf32>
    tpu.vector_store %arg8[%c0_22, %c0_23], %43 {strides = array<i32>} : memref<8x256xf32, #tpu.memory_space<vmem>>, vector<8x256xf32>,
    return
  }
  func.func @transform_0(%arg0: i32) -> (i32, i32) {
    %c0_i32 = arith.constant 0 : i32
    %c0_i32_0 = arith.constant 0 : i32
    return %arg0, %c0_i32 : i32, i32
  }
  func.func @transform_1(%arg0: i32) -> (i32, i32) {
    %c0_i32 = arith.constant 0 : i32
    %c0_i32_0 = arith.constant 0 : i32
    return %arg0, %c0_i32 : i32, i32
  }
  func.func @transform_2(%arg0: i32) -> (i32, i32) {
    %c0_i32 = arith.constant 0 : i32
    %c0_i32_0 = arith.constant 0 : i32
    %c0_i32_1 = arith.constant 0 : i32
    return %c0_i32, %c0_i32_0 : i32, i32
  }
  func.func @transform_3(%arg0: i32) -> (i32, i32) {
    %c0_i32 = arith.constant 0 : i32
    %c0_i32_0 = arith.constant 0 : i32
    %c0_i32_1 = arith.constant 0 : i32
    return %c0_i32, %c0_i32_0 : i32, i32
  }
  func.func @transform_4(%arg0: i32) -> (i32, i32) {
    %c0_i32 = arith.constant 0 : i32
    %c0_i32_0 = arith.constant 0 : i32
    %c0_i32_1 = arith.constant 0 : i32
    return %c0_i32, %c0_i32_0 : i32, i32
  }
  func.func @transform_5(%arg0: i32) -> (i32, i32) {
    %c0_i32 = arith.constant 0 : i32
    %c0_i32_0 = arith.constant 0 : i32
    %c0_i32_1 = arith.constant 0 : i32
    return %c0_i32, %c0_i32_0 : i32, i32
  }
  func.func @transform_6(%arg0: i32) -> (i32, i32) {
    %c0_i32 = arith.constant 0 : i32
    %c0_i32_0 = arith.constant 0 : i32
    %c0_i32_1 = arith.constant 0 : i32
    return %c0_i32, %c0_i32_0 : i32, i32
  }
  func.func @transform_7(%arg0: i32) -> (i32, i32) {
    %c0_i32 = arith.constant 0 : i32
    %c0_i32_0 = arith.constant 0 : i32
    return %arg0, %c0_i32 : i32, i32
  }
}

</mosaic_0001>

<llo_original>
// kernel: tpu_custom_call.1
$region0: #{tpu_custom_call.1}
  #allocation0 [shape = 'u32[]', space=smem, size = 0x4, offset = 0x4, fixed_abs, tag = 'smem constant byte address 0x4 - core index']
  #allocation1 [shape = 'u32[144,128]{1,0:T(1,128)}', space=vmem, size = 0x12000, scoped, tag = 'internal scratch']
  %s0 = inlined_call_operand.vmem [shape: f32[8,32], index: 0, kind: input, shape index: {}]
  %s1 = inlined_call_operand.vmem [shape: f32[8,24], index: 1, kind: input, shape index: {}]
  %s2 = inlined_call_operand.vmem [shape: f32[32,16], index: 2, kind: input, shape index: {}]
  %s3 = inlined_call_operand.vmem [shape: f32[24,16], index: 3, kind: input, shape index: {}]
  %s4 = inlined_call_operand.vmem [shape: f32[16,56], index: 4, kind: input, shape index: {}]
  %s5 = inlined_call_operand.vmem [shape: f32[1,16], index: 5, kind: input, shape index: {}]
  %s6 = inlined_call_operand.vmem [shape: f32[2,56], index: 6, kind: input, shape index: {}]
  %s7 = inlined_call_operand.hbm [shape: f32[8,256], index: 7, kind: output, shape index: {}]
  %s8 = sld [smem:[#allocation0]]
  $region38: #{tpu_custom_call.1} parent=0
    _
  %s10 = ssub.s32 1, %s8
  %s11 = scalar_select 0, %s10, %s8
  $region1: #{tpu_custom_call.1} parent=0
    #allocation2 [shape = 'u8[8192]{0}', space=vmem, size = 0x2000, scoped, tag = 'output window, operand 0, single buffered']
    #allocation3 [shape = 's32[1]{0}', space=sflag, size = 0x4, scoped, tag = 'scoped memory for tpu_custom_call.1']
    %12 = vsyncpa [#allocation3], 0
    // Predicated region
    $region2: #{tpu_custom_call.1} parent=1 // pred_check
      _
    $region3: #{tpu_custom_call.1} parent=1 // pred_check_branch
      %14 = sbr.rel (0) target = $region5
    $region4: #{tpu_custom_call.1} parent=1 // pred_region
      _
    $region5: #{tpu_custom_call.1} parent=1 // pred_fallthru
      _
    // Predicated region
    $region6: #{tpu_custom_call.1} parent=1 // pred_check
      _
    $region7: #{tpu_custom_call.1} parent=1 // pred_check_branch
      %16 = sbr.rel (0) target = $region9
    $region8: #{tpu_custom_call.1} parent=1 // pred_region
      _
    $region9: #{tpu_custom_call.1} parent=1 // pred_fallthru
      _
    // Predicated region
    $region10: #{tpu_custom_call.1} parent=1 // pred_check
      _
    $region11: #{tpu_custom_call.1} parent=1 // pred_check_branch
      %18 = sbr.rel (0) target = $region13
    $region12: #{tpu_custom_call.1} parent=1 // pred_region
      _
    $region13: #{tpu_custom_call.1} parent=1 // pred_fallthru
      _
    // Predicated region
    $region14: #{tpu_custom_call.1} parent=1 // pred_check
      _
    $region15: #{tpu_custom_call.1} parent=1 // pred_check_branch
      %20 = sbr.rel (0) target = $region17
    $region16: #{tpu_custom_call.1} parent=1 // pred_region
      _
    $region17: #{tpu_custom_call.1} parent=1 // pred_fallthru
      _
    // Predicated region
    $region18: #{tpu_custom_call.1} parent=1 // pred_check
      _
    $region19: #{tpu_custom_call.1} parent=1 // pred_check_branch
      %22 = sbr.rel (0) target = $region21
    $region20: #{tpu_custom_call.1} parent=1 // pred_region
      _
    $region21: #{tpu_custom_call.1} parent=1 // pred_fallthru
      _
    // Predicated region
    $region22: #{tpu_custom_call.1} parent=1 // pred_check
      _
    $region23: #{tpu_custom_call.1} parent=1 // pred_check_branch
      %24 = sbr.rel (0) target = $region25
    $region24: #{tpu_custom_call.1} parent=1 // pred_region
      _
    $region25: #{tpu_custom_call.1} parent=1 // pred_fallthru
      _
    // Predicated region
    $region26: #{tpu_custom_call.1} parent=1 // pred_check
      _
    $region27: #{tpu_custom_call.1} parent=1 // pred_check_branch
      %26 = sbr.rel (0) target = $region29
    $region28: #{tpu_custom_call.1} parent=1 // pred_region
      _
    $region29: #{tpu_custom_call.1} parent=1 // pred_fallthru
      _
    %v27 = vld [vmem:[%s0] sm:$0xff]
    %v28 = vld [vmem:[%s1] sm:$0xff]
    %v29 = vmul.f32 %v27, %v27
    %vm30 = vcmask 261120
    %v31 = vsel %vm30, %v29, 0.0
    %32 = vadd.xlane.f32.xlu0 %v31
    %v33 = vpop.xlane.xlu0 %32
    %v34 = vmax.f32 %v33, 1e-24
    %v35 = vrsqrt.pop %v34
    %v36 = vmul.f32 %v27, %v35
    %v37 = vmul.f32 %v28, %v28
    %vm38 = vcmask 195584
    %v39 = vsel %vm38, %v37, 0.0
    %40 = vadd.xlane.f32.xlu0 %v39
    %v41 = vpop.xlane.xlu0 %40
    %v42 = vmax.f32 %v41, 1e-24
    %v43 = vrsqrt.pop %v42
    %v44 = vmul.f32 %v28, %v43
    %v45 = vld [vmem:[%s5] sm:$0x1]
    %v46 = vld [vmem:[%s6] sm:$0x1]
    %v47 = vld [vmem:[%s6 + $0x1] sm:$0x1]
    %v48 = vld [vmem:[%s4] sm:$0xff]
    %v49 = vld [vmem:[%s4 + $0x8] sm:$0xff]
    %v50 = vld [vmem:[%s2] sm:$0xff]
    %v51 = vld [vmem:[%s2 + $0x8] sm:$0xff]
    %v52 = vld [vmem:[%s2 + $0x10] sm:$0xff]
    %v53 = vld [vmem:[%s2 + $0x18] sm:$0xff]
    %v55 = vlaneseq
    %v56 = vshrl.u32 %v55, 7
    %v57 = vsub.s32 0, %v56
    %v58 = vrot.slane %v45, %v57
    %v61 = vsel %vm30, %v36, 0
    %63 = vmatprep.subr.mxu0 0.0
    %64 = vmatpush1.msra.mxu0 0.0
    %65 = vmatprep.subr.mxu0 0.0
    %66 = vmatpush1.msra.mxu0 0.0
    %67 = vmatprep.subr.mxu0 0.0
    %68 = vmatpush1.msra.mxu0 0.0
    %69 = vmatprep.subr.mxu0 0.0
    %70 = vmatpush1.msra.mxu0 0.0
    %71 = vmatprep.subr.mxu0 0.0
    %72 = vmatpush1.msra.mxu0 0.0
    %73 = vmatprep.subr.mxu0 0.0
    %74 = vmatpush1.msra.mxu0 0.0
    %75 = vmatprep.subr.mxu0 0.0
    %76 = vmatpush1.msra.mxu0 0.0
    %77 = vmatprep.subr.mxu0 0.0
    %78 = vmatpush1.msra.mxu0 0.0
    %79 = vmatprep.subr.mxu0 0.0
    %80 = vmatpush1.msra.mxu0 0.0
    %81 = vmatprep.subr.mxu0 0.0
    %82 = vmatpush1.msra.mxu0 0.0
    %83 = vmatprep.subr.mxu0 0.0
    %84 = vmatpush1.msra.mxu0 0.0
    %85 = vmatprep.subr.mxu0 0.0
    %86 = vmatpush1.msra.mxu0 0.0
    %87 = vmatprep.subr.mxu0 0.0
    %88 = vmatpush1.msra.mxu0 %v53
    %89 = vmatprep.subr.mxu0 0.0
    %90 = vmatpush1.msra.mxu0 %v52
    %91 = vmatprep.subr.mxu0 0.0
    %92 = vmatpush1.msra.mxu0 %v51
    %93 = vmatprep.subr.mxu0 0.0
    %94 = vmatpush1.msra.mxu0 %v50
    %95 = vmatprep.subr.mxu0 0.0
    %96 = vmatpush2.msra.mxu0 0.0
    %97 = vmatprep.subr.mxu0 0.0
    %98 = vmatpush2.msra.mxu0 0.0
    %99 = vmatprep.subr.mxu0 0.0
    %100 = vmatpush2.msra.mxu0 0.0
    %101 = vmatprep.subr.mxu0 0.0
    %102 = vmatpush2.msra.mxu0 0.0
    %103 = vmatprep.subr.mxu0 0.0
    %104 = vmatpush2.msra.mxu0 0.0
    %105 = vmatprep.subr.mxu0 0.0
    %106 = vmatpush2.msra.mxu0 0.0
    %107 = vmatprep.subr.mxu0 0.0
    %108 = vmatpush2.msra.mxu0 0.0
    %109 = vmatprep.subr.mxu0 0.0
    %110 = vmatpush2.msra.mxu0 0.0
    %111 = vmatprep.subr.mxu0 0.0
    %112 = vmatpush2.msra.mxu0 0.0
    %113 = vmatprep.subr.mxu0 0.0
    %114 = vmatpush2.msra.mxu0 0.0
    %115 = vmatprep.subr.mxu0 0.0
    %116 = vmatpush2.msra.mxu0 0.0
    %117 = vmatprep.subr.mxu0 0.0
    %118 = vmatpush2.msra.mxu0 0.0
    %119 = vmatprep.subr.mxu0 0.0
    %120 = vmatpush2.msra.mxu0 0.0
    %121 = vmatprep.subr.mxu0 0.0
    %122 = vmatpush2.msra.mxu0 0.0
    %123 = vmatprep.subr.mxu0 0.0
    %124 = vmatpush2.msra.mxu0 0.0
    %125 = vmatprep.subr.mxu0 0.0
    %126 = vmatpush2.msra.mxu0 0.0
    %127 = vmatprep.mubr.f32.mxu0 0.0
    %128 = vmatmul.mubr.f32.gmra.mxu0 %v61
    %v129 = vpop.f32.mrf.mxu0
    %v130 = vadd.f32 %v58, %v129
    %v131 = vpop.f32.mrf.mxu0
    %132 = vdwg.mxu0
    %v133 = vld [vmem:[%s3] sm:$0xff]
    %v134 = vld [vmem:[%s3 + $0x8] sm:$0xff]
    %v135 = vld [vmem:[%s3 + $0x10] sm:$0xff]
    %v137 = vsel %vm38, %v44, 0
    %139 = vmatprep.subr.mxu0 0.0
    %140 = vmatpush1.msra.mxu0 0.0
    %141 = vmatprep.subr.mxu0 0.0
    %142 = vmatpush1.msra.mxu0 0.0
    %143 = vmatprep.subr.mxu0 0.0
    %144 = vmatpush1.msra.mxu0 0.0
    %145 = vmatprep.subr.mxu0 0.0
    %146 = vmatpush1.msra.mxu0 0.0
    %147 = vmatprep.subr.mxu0 0.0
    %148 = vmatpush1.msra.mxu0 0.0
    %149 = vmatprep.subr.mxu0 0.0
    %150 = vmatpush1.msra.mxu0 0.0
    %151 = vmatprep.subr.mxu0 0.0
    %152 = vmatpush1.msra.mxu0 0.0
    %153 = vmatprep.subr.mxu0 0.0
    %154 = vmatpush1.msra.mxu0 0.0
    %155 = vmatprep.subr.mxu0 0.0
    %156 = vmatpush1.msra.mxu0 0.0
    %157 = vmatprep.subr.mxu0 0.0
    %158 = vmatpush1.msra.mxu0 0.0
    %159 = vmatprep.subr.mxu0 0.0
    %160 = vmatpush1.msra.mxu0 0.0
    %161 = vmatprep.subr.mxu0 0.0
    %162 = vmatpush1.msra.mxu0 0.0
    %163 = vmatprep.subr.mxu0 0.0
    %164 = vmatpush1.msra.mxu0 0.0
    %165 = vmatprep.subr.mxu0 0.0
    %166 = vmatpush1.msra.mxu0 %v135
    %167 = vmatprep.subr.mxu0 0.0
    %168 = vmatpush1.msra.mxu0 %v134
    %169 = vmatprep.subr.mxu0 0.0
    %170 = vmatpush1.msra.mxu0 %v133
    %171 = vmatprep.subr.mxu0 0.0
    %172 = vmatpush2.msra.mxu0 0.0
    %173 = vmatprep.subr.mxu0 0.0
    %174 = vmatpush2.msra.mxu0 0.0
    %175 = vmatprep.subr.mxu0 0.0
    %176 = vmatpush2.msra.mxu0 0.0
    %177 = vmatprep.subr.mxu0 0.0
    %178 = vmatpush2.msra.mxu0 0.0
    %179 = vmatprep.subr.mxu0 0.0
    %180 = vmatpush2.msra.mxu0 0.0
    %181 = vmatprep.subr.mxu0 0.0
    %182 = vmatpush2.msra.mxu0 0.0
    %183 = vmatprep.subr.mxu0 0.0
    %184 = vmatpush2.msra.mxu0 0.0
    %185 = vmatprep.subr.mxu0 0.0
    %186 = vmatpush2.msra.mxu0 0.0
    %187 = vmatprep.subr.mxu0 0.0
    %188 = vmatpush2.msra.mxu0 0.0
    %189 = vmatprep.subr.mxu0 0.0
    %190 = vmatpush2.msra.mxu0 0.0
    %191 = vmatprep.subr.mxu0 0.0
    %192 = vmatpush2.msra.mxu0 0.0
    %193 = vmatprep.subr.mxu0 0.0
    %194 = vmatpush2.msra.mxu0 0.0
    %195 = vmatprep.subr.mxu0 0.0
    %196 = vmatpush2.msra.mxu0 0.0
    %197 = vmatprep.subr.mxu0 0.0
    %198 = vmatpush2.msra.mxu0 0.0
    %199 = vmatprep.subr.mxu0 0.0
    %200 = vmatpush2.msra.mxu0 0.0
    %201 = vmatprep.subr.mxu0 0.0
    %202 = vmatpush2.msra.mxu0 0.0
    %203 = vmatprep.mubr.f32.mxu0 0.0
    %204 = vmatmul.mubr.f32.gmra.mxu0 %v137
    %v205 = vpop.f32.mrf.mxu0
    %v206 = vadd.f32 %v58, %v205
    %v207 = vpop.f32.mrf.mxu0
    %208 = vdwg.mxu0
    %v209 = vadd.f32 %v130, %v206
    %v210 = vsub.f32 %v209, %v58
    %v211 = vlaneseq
    %v212 = vshrl.u32 %v211, 7
    %v213 = vsub.s32 0, %v212
    %v214 = vrot.slane %v46, %v213
    %vm215 = vcmask 130048
    %v217 = vsel %vm215, %v130, 0
    %219 = vmatprep.subr.mxu0 0.0
    %220 = vmatpush1.msra.mxu0 0.0
    %221 = vmatprep.subr.mxu0 0.0
    %222 = vmatpush1.msra.mxu0 0.0
    %223 = vmatprep.subr.mxu0 0.0
    %224 = vmatpush1.msra.mxu0 0.0
    %225 = vmatprep.subr.mxu0 0.0
    %226 = vmatpush1.msra.mxu0 0.0
    %227 = vmatprep.subr.mxu0 0.0
    %228 = vmatpush1.msra.mxu0 0.0
    %229 = vmatprep.subr.mxu0 0.0
    %230 = vmatpush1.msra.mxu0 0.0
    %231 = vmatprep.subr.mxu0 0.0
    %232 = vmatpush1.msra.mxu0 0.0
    %233 = vmatprep.subr.mxu0 0.0
    %234 = vmatpush1.msra.mxu0 0.0
    %235 = vmatprep.subr.mxu0 0.0
    %236 = vmatpush1.msra.mxu0 0.0
    %237 = vmatprep.subr.mxu0 0.0
    %238 = vmatpush1.msra.mxu0 0.0
    %239 = vmatprep.subr.mxu0 0.0
    %240 = vmatpush1.msra.mxu0 0.0
    %241 = vmatprep.subr.mxu0 0.0
    %242 = vmatpush1.msra.mxu0 0.0
    %243 = vmatprep.subr.mxu0 0.0
    %244 = vmatpush1.msra.mxu0 0.0
    %245 = vmatprep.subr.mxu0 0.0
    %246 = vmatpush1.msra.mxu0 0.0
    %247 = vmatprep.subr.mxu0 0.0
    %248 = vmatpush1.msra.mxu0 %v49
    %249 = vmatprep.subr.mxu0 0.0
    %250 = vmatpush1.msra.mxu0 %v48
    %251 = vmatprep.subr.mxu0 0.0
    %252 = vmatpush2.msra.mxu0 0.0
    %253 = vmatprep.subr.mxu0 0.0
    %254 = vmatpush2.msra.mxu0 0.0
    %255 = vmatprep.subr.mxu0 0.0
    %256 = vmatpush2.msra.mxu0 0.0
    %257 = vmatprep.subr.mxu0 0.0
    %258 = vmatpush2.msra.mxu0 0.0
    %259 = vmatprep.subr.mxu0 0.0
    %260 = vmatpush2.msra.mxu0 0.0
    %261 = vmatprep.subr.mxu0 0.0
    %262 = vmatpush2.msra.mxu0 0.0
    %263 = vmatprep.subr.mxu0 0.0
    %264 = vmatpush2.msra.mxu0 0.0
    %265 = vmatprep.subr.mxu0 0.0
    %266 = vmatpush2.msra.mxu0 0.0
    %267 = vmatprep.subr.mxu0 0.0
    %268 = vmatpush2.msra.mxu0 0.0
    %269 = vmatprep.subr.mxu0 0.0
    %270 = vmatpush2.msra.mxu0 0.0
    %271 = vmatprep.subr.mxu0 0.0
    %272 = vmatpush2.msra.mxu0 0.0
    %273 = vmatprep.subr.mxu0 0.0
    %274 = vmatpush2.msra.mxu0 0.0
    %275 = vmatprep.subr.mxu0 0.0
    %276 = vmatpush2.msra.mxu0 0.0
    %277 = vmatprep.subr.mxu0 0.0
    %278 = vmatpush2.msra.mxu0 0.0
    %279 = vmatprep.subr.mxu0 0.0
    %280 = vmatpush2.msra.mxu0 0.0
    %281 = vmatprep.subr.mxu0 0.0
    %282 = vmatpush2.msra.mxu0 0.0
    %283 = vmatprep.mubr.f32.mxu0 0.0
    %284 = vmatmul.mubr.f32.gmra.mxu0 %v217
    %v285 = vpop.f32.mrf.mxu0
    %v286 = vadd.f32 %v214, %v285
    %v287 = vpop.f32.mrf.mxu0
    %288 = vdwg.mxu0
    %v290 = vsel %vm215, %v206, 0
    %292 = vmatprep.subr.mxu0 0.0
    %293 = vmatpush1.msra.mxu0 0.0
    %294 = vmatprep.subr.mxu0 0.0
    %295 = vmatpush1.msra.mxu0 0.0
    %296 = vmatprep.subr.mxu0 0.0
    %297 = vmatpush1.msra.mxu0 0.0
    %298 = vmatprep.subr.mxu0 0.0
    %299 = vmatpush1.msra.mxu0 0.0
    %300 = vmatprep.subr.mxu0 0.0
    %301 = vmatpush1.msra.mxu0 0.0
    %302 = vmatprep.subr.mxu0 0.0
    %303 = vmatpush1.msra.mxu0 0.0
    %304 = vmatprep.subr.mxu0 0.0
    %305 = vmatpush1.msra.mxu0 0.0
    %306 = vmatprep.subr.mxu0 0.0
    %307 = vmatpush1.msra.mxu0 0.0
    %308 = vmatprep.subr.mxu0 0.0
    %309 = vmatpush1.msra.mxu0 0.0
    %310 = vmatprep.subr.mxu0 0.0
    %311 = vmatpush1.msra.mxu0 0.0
    %312 = vmatprep.subr.mxu0 0.0
    %313 = vmatpush1.msra.mxu0 0.0
    %314 = vmatprep.subr.mxu0 0.0
    %315 = vmatpush1.msra.mxu0 0.0
    %316 = vmatprep.subr.mxu0 0.0
    %317 = vmatpush1.msra.mxu0 0.0
    %318 = vmatprep.subr.mxu0 0.0
    %319 = vmatpush1.msra.mxu0 0.0
    %320 = vmatprep.subr.mxu0 0.0
    %321 = vmatpush1.msra.mxu0 %v49
    %322 = vmatprep.subr.mxu0 0.0
    %323 = vmatpush1.msra.mxu0 %v48
    %324 = vmatprep.subr.mxu0 0.0
    %325 = vmatpush2.msra.mxu0 0.0
    %326 = vmatprep.subr.mxu0 0.0
    %327 = vmatpush2.msra.mxu0 0.0
    %328 = vmatprep.subr.mxu0 0.0
    %329 = vmatpush2.msra.mxu0 0.0
    %330 = vmatprep.subr.mxu0 0.0
    %331 = vmatpush2.msra.mxu0 0.0
    %332 = vmatprep.subr.mxu0 0.0
    %333 = vmatpush2.msra.mxu0 0.0
    %334 = vmatprep.subr.mxu0 0.0
    %335 = vmatpush2.msra.mxu0 0.0
    %336 = vmatprep.subr.mxu0 0.0
    %337 = vmatpush2.msra.mxu0 0.0
    %338 = vmatprep.subr.mxu0 0.0
    %339 = vmatpush2.msra.mxu0 0.0
    %340 = vmatprep.subr.mxu0 0.0
    %341 = vmatpush2.msra.mxu0 0.0
    %342 = vmatprep.subr.mxu0 0.0
    %343 = vmatpush2.msra.mxu0 0.0
    %344 = vmatprep.subr.mxu0 0.0
    %345 = vmatpush2.msra.mxu0 0.0
    %346 = vmatprep.subr.mxu0 0.0
    %347 = vmatpush2.msra.mxu0 0.0
    %348 = vmatprep.subr.mxu0 0.0
    %349 = vmatpush2.msra.mxu0 0.0
    %350 = vmatprep.subr.mxu0 0.0
    %351 = vmatpush2.msra.mxu0 0.0
    %352 = vmatprep.subr.mxu0 0.0
    %353 = vmatpush2.msra.mxu0 0.0
    %354 = vmatprep.subr.mxu0 0.0
    %355 = vmatpush2.msra.mxu0 0.0
    %356 = vmatprep.mubr.f32.mxu0 0.0
    %357 = vmatmul.mubr.f32.gmra.mxu0 %v290
    %v358 = vpop.f32.mrf.mxu0
    %v359 = vadd.f32 %v214, %v358
    %v360 = vpop.f32.mrf.mxu0
    %361 = vdwg.mxu0
    %v362 = vadd.f32 %v286, %v359
    %v363 = vlaneseq
    %v364 = vshrl.u32 %v363, 7
    %v365 = vsub.s32 0, %v364
    %v366 = vrot.slane %v47, %v365
    %v367 = vsub.f32 %v362, %v366
    %368 = vrot.lane.b32.xlu0 %v206, 16
    %v369 = vpop.permute.xlu0 %368
    %372 = vrot.lane.b32.xlu0 %v210, 32
    %v373 = vpop.permute.xlu0 %372
    %376 = vrot.lane.b32.xlu0 %v286, 48
    %v377 = vpop.permute.xlu0 %376
    %380 = vrot.lane.b32.xlu0 %v359, 104
    %v381 = vpop.permute.xlu0 %380
    %384 = vrot.lane.b32.xlu0 %v367, 32
    %v385 = vpop.permute.xlu0 %384
    %v387 = vsel %vm215, %v130, %v369
    %v388 = vsel %vm30, %v387, %v373
    %vm389 = vcmask 392192
    %v390 = vsel %vm389, %v388, %v377
    %vm391 = vcmask 850944
    %v392 = vsel %vm391, %v390, %v381
    %v393 = vsel %vm30, %v381, %v385
    %vm394 = vcmask 719872
    %v395 = vsel %vm394, %v393, 0.0
    %396 = vst [vmem:[#allocation2] sm:$0xff] %v392
    %397 = vst [vmem:[#allocation2 + $0x8] sm:$0xff] %v395
    // Predicated region
    $region30: #{tpu_custom_call.1} parent=1 // pred_check
      _
    $region31: #{tpu_custom_call.1} parent=1 // pred_check_branch
      %399 = sbr.rel (0) target = $region33
    $region32: #{tpu_custom_call.1} parent=1 // pred_region
      %s401 = ssub.s32 256, 256
      %402 = vsyncadd [#allocation3], %s401
      %s404 = sshll.u32 [#allocation2], 4
      %s405 = int_to_ptr.vmem [resolvable:$true] %s404
      %407 = dma.vmem_to_hbm [thread:$0]  %s405, 256, %s7, [#allocation3]
    $region33: #{tpu_custom_call.1} parent=1 // pred_fallthru
      _
    // Predicated region
    $region34: #{tpu_custom_call.1} parent=1 // pred_check
      _
    $region35: #{tpu_custom_call.1} parent=1 // pred_check_branch
      %409 = sbr.rel (0) target = $region37
    $region36: #{tpu_custom_call.1} parent=1 // pred_region
      %410 = dma.done [#allocation3], 256
    $region37: #{tpu_custom_call.1} parent=1 // pred_fallthru
      _
    %411 = vsyncpa [#allocation3], 1

</llo_original>
